<compile_context>
chip_gen: v5e
topology: v5e:2x2
jax: 0.10.0
libtpu: 0.0.40
codegen_flags: <defaults>
</compile_context>

<pallas_src>
import jax
import jax.numpy as jnp
from jax.experimental import pallas as pl
from jax.experimental.pallas import tpu as pltpu

LANES = 128
ACC_ROWS = 256                 # fixed accumulator rows (multiple of 8/16/32)
TARGET_TILE_BYTES = 4 << 20    # per input per grid step (=> 8 MiB HBM traffic/step)
MAX_TILE_BYTES = 8 << 20       # hard cap for user-supplied tile_rows


def _detect_num_tensorcores():
    """Best-effort TensorCores-per-device (2 on v7x-style chips, else 1)."""
    try:
        info = pltpu.get_tpu_info()
        for attr in ("num_cores", "core_count", "tensorcore_count",
                     "num_tensorcores", "tensorcores_per_chip"):
            n = getattr(info, attr, None)
            if isinstance(n, int) and n > 0:
                return min(int(n), 2)
    except Exception:
        pass
    try:
        kind = jax.devices()[0].device_kind.lower()
        if "v7" in kind:
            return 2
    except Exception:
        pass
    return 1


def _make_mse_kernel(tile_rows, acc_rows, valid_rows, total_blocks, needs_mask):
    """sum((p - a)^2) over tiles -> per-core partial sum (SMEM scalar)."""
    folds = tile_rows // acc_rows

    def _fold(sq):
        # Pure VALU vreg adds into the small fixed accumulator (no XLU).
        if folds == 1:
            return sq
        return sq.reshape(folds, acc_rows, LANES).sum(axis=0)

    def kernel(p_ref, a_ref, o_ref, acc_ref):
        i = pl.program_id(1)  # reduction ("arbitrary") axis

        @pl.when(i == 0)
        def _init():
            acc_ref[...] = jnp.zeros_like(acc_ref)

        d = p_ref[...].astype(jnp.float32) - a_ref[...].astype(jnp.float32)
        sq = d * d

        if needs_mask:
            blk = pl.program_id(0) * pl.num_programs(1) + i

            # Interior tiles: unmasked fast path (no iota / cmp / select).
            @pl.when(blk < total_blocks - 1)
            def _fast():
                acc_ref[...] += _fold(sq)

            # Last real tile (possibly partial) and any clamped padding tile.
            @pl.when(blk >= total_blocks - 1)
            def _masked():
                row0 = blk * tile_rows
                row_idx = row0 + jax.lax.broadcasted_iota(jnp.int32, sq.shape, 0)
                sq_m = jnp.where(row_idx < valid_rows, sq, 0.0)
                acc_ref[...] += _fold(sq_m)
        else:
            acc_ref[...] += _fold(sq)

        @pl.when(i == pl.num_programs(1) - 1)
        def _finalize():
            # Single end-of-stream cross-lane reduce of the small accumulator.
            o_ref[0, 0] = jnp.sum(acc_ref[...])

    return kernel


def diffusion_mse_loss(predicted_noise, actual_noise, *,
                       tile_rows=None, small_threshold=65536,
                       force_pallas=False, ncores=None):
    """MSE loss == F.mse_loss(predicted_noise, actual_noise) (mean reduction)."""
    assert predicted_noise.shape == actual_noise.shape, (
        predicted_noise.shape, actual_noise.shape)
    n_elem = int(predicted_noise.size)
    itemsize = min(4, jnp.dtype(predicted_noise.dtype).itemsize)
    sub_mult = 8 * (4 // itemsize)   # native sublane packing: 8 f32, 16 bf16, 32 int8

    lane_aligned = (n_elem % LANES == 0) and (n_elem // LANES >= sub_mult)
    big_enough = force_pallas or (n_elem >= small_threshold)
    if not (lane_aligned and big_enough):
        # Small / misaligned inputs: plain fused reduce beats a kernel launch.
        d = predicted_noise.astype(jnp.float32) - actual_noise.astype(jnp.float32)
        return jnp.mean(d * d)

    rows = n_elem // LANES

    # --- tile sizing -------------------------------------------------------
    if tile_rows is None:
        tile_rows = TARGET_TILE_BYTES // (LANES * itemsize)
    max_rows = MAX_TILE_BYTES // (LANES * itemsize)
    tr = min(int(tile_rows), rows, max_rows)
    if tr >= ACC_ROWS:
        tr = (tr // ACC_ROWS) * ACC_ROWS   # ACC_ROWS is a multiple of every sub_mult
        acc_rows = ACC_ROWS
    else:
        tr = max(sub_mult, (tr // sub_mult) * sub_mult)
        acc_rows = tr

    # --- core split --------------------------------------------------------
    detected = _detect_num_tensorcores()
    nc = int(ncores) if ncores is not None else detected
    nc = max(1, min(nc, 2))

    total_blocks = pl.cdiv(rows, tr)
    nc = min(nc, total_blocks)
    blocks_per_core = pl.cdiv(total_blocks, nc)
    grid = (nc, blocks_per_core)

    needs_mask = (nc * blocks_per_core * tr) != rows
    needs_clamp = (nc * blocks_per_core) > total_blocks

    def in_index_map(c, i):
        blk = c * blocks_per_core + i
        if needs_clamp:
            # Padding blocks re-read the last real block; kernel masks them out.
            blk = jnp.minimum(blk, total_blocks - 1)
        return (blk, 0)

    # Only request a true per-core split on chips that actually have 2 TCs.
    lead_sem = pltpu.CORE_PARALLEL if (nc > 1 and detected > 1) else pltpu.PARALLEL
    working_bytes = 2 * 2 * tr * LANES * itemsize + acc_rows * LANES * 4
    vmem_limit = int(min(48 << 20, max(24 << 20, int(working_bytes * 1.5))))

    # No astype / pad in the wrapper: reshape is a no-copy view of the
    # row-major data; the kernel casts per-tile and masks the tail.
    p2d = predicted_noise.reshape(rows, LANES)
    a2d = actual_noise.reshape(rows, LANES)

    partial_sums = pl.pallas_call(
        _make_mse_kernel(tr, acc_rows, rows, total_blocks, needs_mask),
        out_shape=jax.ShapeDtypeStruct((nc, 1), jnp.float32),
        grid_spec=pltpu.PrefetchScalarGridSpec(
            num_scalar_prefetch=0,
            grid=grid,
            in_specs=[
                pl.BlockSpec((tr, LANES), in_index_map),
                pl.BlockSpec((tr, LANES), in_index_map),
            ],
            out_specs=pl.BlockSpec((1, 1), lambda c, i: (c, 0),
                                   memory_space=pltpu.SMEM),
            scratch_shapes=[pltpu.VMEM((acc_rows, LANES), jnp.float32)],
        ),
        compiler_params=pltpu.CompilerParams(
            dimension_semantics=(lead_sem, pltpu.ARBITRARY),
            vmem_limit_bytes=vmem_limit,
        ),
        cost_estimate=pl.CostEstimate(
            flops=3 * n_elem,
            transcendentals=0,
            bytes_accessed=2 * n_elem * itemsize + nc * 4,
        ),
    )(p2d, a2d)

    return jnp.sum(partial_sums) / jnp.float32(n_elem)


class DiffusionLoss:
    """JAX/Pallas port of the PyTorch DiffusionLoss module."""

    def __init__(self, diffusion_model=None):
        # diffusion_model is held but unused in forward, matching the reference.
        self.diffusion_model = diffusion_model

    def __call__(self, predicted_noise, actual_noise):
        return diffusion_mse_loss(predicted_noise, actual_noise)


if __name__ == "__main__":
    key = jax.random.PRNGKey(0)
    k1, k2, k3, k4, k5, k6 = jax.random.split(key, 6)

    loss_fn = DiffusionLoss(diffusion_model=None)

    def ref_mse(p, a):
        d = p.astype(jnp.float32) - a.astype(jnp.float32)
        return jnp.mean(d * d)

    # Case 1: NCHW small shape (batch=2, channels=4, 16x16); force the Pallas path.
    p1 = jax.random.normal(k1, (2, 4, 16, 16), dtype=jnp.float32)
    a1 = jax.random.normal(k2, (2, 4, 16, 16), dtype=jnp.float32)
    loss1 = jax.block_until_ready(diffusion_mse_loss(p1, a1, force_pallas=True))
    assert jnp.allclose(loss1, ref_mse(p1, a1), rtol=1e-5, atol=1e-6), loss1

    # Case 2: partial final tile -> gated tail-mask path.
    p2 = jax.random.normal(k3, (2, 4, 16, 24), dtype=jnp.float32)
    a2 = jax.random.normal(k4, (2, 4, 16, 24), dtype=jnp.float32)
    loss2 = jax.block_until_ready(
        diffusion_mse_loss(p2, a2, tile_rows=16, force_pallas=True))
    assert jnp.allclose(loss2, ref_mse(p2, a2), rtol=1e-5, atol=1e-6), loss2

    # Case 3: forced 2-way split -> clamped padding block + mask.
    # (Serial but correct on 1-TC chips; genuine CORE_PARALLEL split on v7x.)
    loss3 = jax.block_until_ready(
        diffusion_mse_loss(p2, a2, tile_rows=8, force_pallas=True, ncores=2))
    assert jnp.allclose(loss3, ref_mse(p2, a2), rtol=1e-5, atol=1e-6), loss3

    # Case 4: bf16 inputs (16-row sublane packing granularity, in-kernel cast).
    p4 = p1.astype(jnp.bfloat16)
    a4 = a1.astype(jnp.bfloat16)
    loss4 = jax.block_until_ready(diffusion_mse_loss(p4, a4, force_pallas=True))
    assert jnp.allclose(loss4, ref_mse(p4, a4), rtol=1e-5, atol=1e-5), loss4

    # Case 5: module-style call, large enough for the real Pallas path; exercises
    # the fixed-accumulator fold (folds > 1), multi-step grid, and tail mask.
    p5 = jax.random.normal(k5, (2, 4, 96, 96), dtype=jnp.float32)
    a5 = jax.random.normal(k6, (2, 4, 96, 96), dtype=jnp.float32)
    loss5 = jax.block_until_ready(loss_fn(p5, a5))
    assert jnp.allclose(loss5, ref_mse(p5, a5), rtol=1e-5, atol=1e-6), loss5

    print("KERNEL_OK")
</pallas_src>

<mosaic_0001>
module attributes {stable_mosaic.version = 11 : i64} {
  func.func @kernel(%arg0: i32, %arg1: i32, %arg2: memref<16x128xf32, #tpu.memory_space<vmem>>, %arg3: memref<16x128xf32, #tpu.memory_space<vmem>>, %arg4: memref<1x1xf32, #tpu.memory_space<smem>>, %arg5: memref<16x128xf32, #tpu.memory_space<vmem>>) attributes {dimension_semantics = [#tpu.dimension_semantics<parallel>, #tpu.dimension_semantics<arbitrary>], iteration_bounds = array<i64: 1, 1>, scalar_prefetch = 0 : i64, scratch_operands = 1 : i64, tpu.core_type = #tpu.core_type<tc>, window_params = [{transform_indices = @transform_0, window_bounds = array<i64: 16, 128>}, {transform_indices = @transform_1, window_bounds = array<i64: 16, 128>}, {transform_indices = @transform_2, window_bounds = array<i64: 1, 1>}]} {
    %c0_i32 = arith.constant 0 : i32
    %0 = arith.cmpi eq, %arg1, %c0_i32 : i32
    %1 = arith.extui %0 : i1 to i32
    %c0_i32_0 = arith.constant 0 : i32
    %2 = arith.cmpi ne, %1, %c0_i32_0 : i32
    scf.if %2 {
      %cst = arith.constant 0.000000e+00 : f32
      %13 = vector.broadcast %cst : f32 to vector<16x128xf32>
      %c0_10 = arith.constant 0 : index
      %c0_11 = arith.constant 0 : index
      %14 = vector.load %arg5[%c0_10, %c0_11] : memref<16x128xf32, #tpu.memory_space<vmem>>, vector<16x128xf32>
      tpu.vector_store %arg5[%c0_10, %c0_11], %13 {strides = array<i32>} : memref<16x128xf32, #tpu.memory_space<vmem>>, vector<16x128xf32>,
    } else {
    }
    %c0 = arith.constant 0 : index
    %c0_1 = arith.constant 0 : index
    %3 = vector.load %arg2[%c0, %c0_1] : memref<16x128xf32, #tpu.memory_space<vmem>>, vector<16x128xf32>
    %c0_2 = arith.constant 0 : index
    %c0_3 = arith.constant 0 : index
    %4 = vector.load %arg3[%c0_2, %c0_3] : memref<16x128xf32, #tpu.memory_space<vmem>>, vector<16x128xf32>
    %5 = arith.subf %3, %4 : vector<16x128xf32>
    %6 = arith.mulf %5, %5 : vector<16x128xf32>
    %c0_4 = arith.constant 0 : index
    %c0_5 = arith.constant 0 : index
    %7 = vector.load %arg5[%c0_4, %c0_5] : memref<16x128xf32, #tpu.memory_space<vmem>>, vector<16x128xf32>
    %8 = arith.addf %7, %6 : vector<16x128xf32>
    %c0_6 = arith.constant 0 : index
    %c0_7 = arith.constant 0 : index
    %9 = vector.load %arg5[%c0_6, %c0_7] : memref<16x128xf32, #tpu.memory_space<vmem>>, vector<16x128xf32>
    tpu.vector_store %arg5[%c0_6, %c0_7], %8 {strides = array<i32>} : memref<16x128xf32, #tpu.memory_space<vmem>>, vector<16x128xf32>,
    %c0_i32_8 = arith.constant 0 : i32
    %10 = arith.cmpi eq, %arg1, %c0_i32_8 : i32
    %11 = arith.extui %10 : i1 to i32
    %c0_i32_9 = arith.constant 0 : i32
    %12 = arith.cmpi ne, %11, %c0_i32_9 : i32
    scf.if %12 {
      %c0_10 = arith.constant 0 : index
      %c0_11 = arith.constant 0 : index
      %13 = vector.load %arg5[%c0_10, %c0_11] : memref<16x128xf32, #tpu.memory_space<vmem>>, vector<16x128xf32>
      %14 = vector.shape_cast %13 : vector<16x128xf32> to vector<1x16x128xf32>
      %cst = arith.constant dense<0.000000e+00> : vector<1xf32>
      %15 = vector.multi_reduction <add>, %14, %cst [1, 2] : vector<1x16x128xf32> to vector<1xf32>
      %16 = vector.shape_cast %15 : vector<1xf32> to vector<1x1x1xf32>
      %17 = vector.extract %16[0, 0, 0] : f32 from vector<1x1x1xf32>
      %c0_12 = arith.constant 0 : index
      %c0_13 = arith.constant 0 : index
      %18 = memref.load %arg4[%c0_12, %c0_13] : memref<1x1xf32, #tpu.memory_space<smem>>
      memref.store %17, %arg4[%c0_12, %c0_13] : memref<1x1xf32, #tpu.memory_space<smem>>
    } else {
    }
    return
  }
  func.func @transform_0(%arg0: i32, %arg1: i32) -> (i32, i32) {
    %c1_i32 = arith.constant 1 : i32
    %0 = arith.muli %arg0, %c1_i32 : i32
    %1 = arith.addi %0, %arg1 : i32
    %c0_i32 = arith.constant 0 : i32
    %c0_i32_0 = arith.constant 0 : i32
    return %1, %c0_i32 : i32, i32
  }
  func.func @transform_1(%arg0: i32, %arg1: i32) -> (i32, i32) {
    %c1_i32 = arith.constant 1 : i32
    %0 = arith.muli %arg0, %c1_i32 : i32
    %1 = arith.addi %0, %arg1 : i32
    %c0_i32 = arith.constant 0 : i32
    %c0_i32_0 = arith.constant 0 : i32
    return %1, %c0_i32 : i32, i32
  }
  func.func @transform_2(%arg0: i32, %arg1: i32) -> (i32, i32) {
    %c0_i32 = arith.constant 0 : i32
    %c0_i32_0 = arith.constant 0 : i32
    return %arg0, %c0_i32 : i32, i32
  }
}

</mosaic_0001>

<llo_original>
// kernel: tpu_custom_call.1
$region0: #{tpu_custom_call.1}
  #allocation0 [shape = 'u32[]', space=smem, size = 0x4, offset = 0x4, fixed_abs, tag = 'smem constant byte address 0x4 - core index']
  #allocation1 [shape = 'u32[72,128]{1,0:T(1,128)}', space=vmem, size = 0x9000, scoped, tag = 'internal scratch']
  #allocation2 [shape = 'f32[16,128]{1,0:T(8,128)}', space=vmem, size = 0x2000, scoped, tag = 'scratch operand']
  %s0 = inlined_call_operand.hbm [shape: f32[16,128], index: 0, kind: input, shape index: {}]
  %s1 = inlined_call_operand.hbm [shape: f32[16,128], index: 1, kind: input, shape index: {}]
  %s2 = inlined_call_operand.hbm [shape: f32[1,1], index: 2, kind: output, shape index: {}]
  %s3 = sld [smem:[#allocation0]]
  $region34: #{tpu_custom_call.1} parent=0
    _
  %s5 = ssub.s32 1, %s3
  %s6 = scalar_select 0, %s5, %s3
  $region1: #{tpu_custom_call.1} parent=0
    #allocation3 [shape = 'u8[8192]{0}', space=vmem, size = 0x2000, scoped, tag = 'input window, operand 0, single buffered']
    #allocation4 [shape = 's32[1]{0}', space=sflag, size = 0x4, scoped, tag = 'scoped memory for tpu_custom_call.1']
    #allocation5 [shape = 's32[1]{0}', space=sflag, size = 0x4, scoped, tag = 'scoped memory for tpu_custom_call.1']
    #allocation6 [shape = 'u8[8192]{0}', space=vmem, size = 0x2000, scoped, tag = 'input window, operand 1, single buffered']
    #allocation7 [shape = 's32[1]{0}', space=sflag, size = 0x4, scoped, tag = 'scoped memory for tpu_custom_call.1']
    #allocation8 [shape = 'u8[512]{0}', space=smem, size = 0x200, scoped, tag = 'output window, operand 0, single buffered']
    %7 = vsyncpa [#allocation4], 0
    %8 = vsyncpa [#allocation7], 0
    %9 = vsyncpa [#allocation5], 0
    // Predicated region
    $region2: #{tpu_custom_call.1} parent=1 // pred_check
      _
    $region3: #{tpu_custom_call.1} parent=1 // pred_check_branch
      %11 = sbr.rel (0) target = $region5
    $region4: #{tpu_custom_call.1} parent=1 // pred_region
      %s12 = sadd.s32 0, 0
      %s13 = smul.u32 2, %s12
      %15 = vsyncadd [#allocation4], 0
      %s16 = smul.addr %s13, 8
      %s17 = scalar_lea.hbm %s0, %s16
      %s18 = sshll.u32 %s17, 4
      %s19 = int_to_ptr.hbm [resolvable:$true] %s18
      %s20 = sshll.u32 [#allocation3], 4
      %s21 = int_to_ptr.vmem [resolvable:$true] %s20
      %26 = dma.hbm_to_vmem [thread:$0]  %s19, 256, %s21, [#allocation4], 128, 128, 8
    $region5: #{tpu_custom_call.1} parent=1 // pred_fallthru
      _
    // Predicated region
    $region6: #{tpu_custom_call.1} parent=1 // pred_check
      _
    $region7: #{tpu_custom_call.1} parent=1 // pred_check_branch
      %28 = sbr.rel (0) target = $region9
    $region8: #{tpu_custom_call.1} parent=1 // pred_region
      %s29 = sadd.s32 0, 0
      %s30 = smul.u32 2, %s29
      %32 = vsyncadd [#allocation7], 0
      %s33 = smul.addr %s30, 8
      %s34 = scalar_lea.hbm %s1, %s33
      %s35 = sshll.u32 %s34, 4
      %s36 = int_to_ptr.hbm [resolvable:$true] %s35
      %s37 = sshll.u32 [#allocation6], 4
      %s38 = int_to_ptr.vmem [resolvable:$true] %s37
      %43 = dma.hbm_to_vmem [thread:$0]  %s36, 256, %s38, [#allocation7], 128, 128, 8
    $region9: #{tpu_custom_call.1} parent=1 // pred_fallthru
      _
    // Predicated region
    $region10: #{tpu_custom_call.1} parent=1 // pred_check
      _
    $region11: #{tpu_custom_call.1} parent=1 // pred_check_branch
      %45 = sbr.rel (0) target = $region13
    $region12: #{tpu_custom_call.1} parent=1 // pred_region
      %47 = dma.done [#allocation4], 256
    $region13: #{tpu_custom_call.1} parent=1 // pred_fallthru
      _
    // Predicated region
    $region14: #{tpu_custom_call.1} parent=1 // pred_check
      _
    $region15: #{tpu_custom_call.1} parent=1 // pred_check_branch
      %49 = sbr.rel (0) target = $region17
    $region16: #{tpu_custom_call.1} parent=1 // pred_region
      %51 = dma.done [#allocation7], 256
    $region17: #{tpu_custom_call.1} parent=1 // pred_fallthru
      _
    %s52 = sadd.s32 0, 0
    %s53 = smul.u32 2, %s52
    %s54 = sadd.s32 0, 0
    %s55 = smul.u32 2, %s54
    %p56 = scmp.eq.s32.totalorder 0, 0
    // Predicated region
    $region18: #{tpu_custom_call.1} parent=1 // pred_check
      %p57 = pneg %p56
    $region19: #{tpu_custom_call.1} parent=1 // pred_check_branch
      %59 = sbr.rel (%p57) target = $region21
    $region20: #{tpu_custom_call.1} parent=1 // pred_region
      %60 = vst [vmem:[#allocation2] sm:$0xff] 0.0
      %61 = vst [vmem:[#allocation2 + $0x8] sm:$0xff] 0.0
    $region21: #{tpu_custom_call.1} parent=1 // pred_fallthru
      _
    %v62 = vld [vmem:[#allocation3] sm:$0xff]
    %v63 = vld [vmem:[#allocation3 + $0x8] sm:$0xff]
    %v64 = vld [vmem:[#allocation6] sm:$0xff]
    %v65 = vld [vmem:[#allocation6 + $0x8] sm:$0xff]
    %v66 = vsub.f32 %v62, %v64
    %v67 = vsub.f32 %v63, %v65
    %v68 = vmul.f32 %v66, %v66
    %v69 = vmul.f32 %v67, %v67
    %v70 = vld [vmem:[#allocation2] sm:$0xff]
    %v71 = vld [vmem:[#allocation2 + $0x8] sm:$0xff]
    %v72 = vadd.f32 %v70, %v68
    %v73 = vadd.f32 %v71, %v69
    %74 = vst [vmem:[#allocation2] sm:$0xff] %v72
    %75 = vst [vmem:[#allocation2 + $0x8] sm:$0xff] %v73
    // Predicated region
    $region22: #{tpu_custom_call.1} parent=1 // pred_check
      %p76 = pneg %p56
    $region23: #{tpu_custom_call.1} parent=1 // pred_check_branch
      %78 = sbr.rel (%p76) target = $region25
    $region24: #{tpu_custom_call.1} parent=1 // pred_region
      %v79 = vld [vmem:[#allocation2] sm:$0xff]
      %v80 = vld [vmem:[#allocation2 + $0x8] sm:$0xff]
      %v81 = vadd.f32 %v79, %v80
      %82 = vadd.xlane.f32.xlu0 %v81
      %v83 = vpop.xlane.xlu0 %82
      %v84 = vrot.slane %v83, 4
      %v85 = vadd.f32 %v83, %v84
      %v86 = vrot.slane %v85, 2
      %v87 = vadd.f32 %v85, %v86
      %v88 = vrot.slane %v87, 1
      %v89 = vadd.f32 %v87, %v88
      %s90 = vtos %v89
      %s91 = scalar_lea.smem [#allocation8], 0
      %92 = sst [smem:[%s91]] %s90
    $region25: #{tpu_custom_call.1} parent=1 // pred_fallthru
      _
    // Predicated region
    $region26: #{tpu_custom_call.1} parent=1 // pred_check
      _
    $region27: #{tpu_custom_call.1} parent=1 // pred_check_branch
      %94 = sbr.rel (0) target = $region29
    $region28: #{tpu_custom_call.1} parent=1 // pred_region
      %96 = vsyncadd [#allocation5], 0
      %s98 = sshll.u32 %s2, 4
      %s99 = int_to_ptr.hbm [resolvable:$true] %s98
      %101 = dma.smem_to_hbm [#allocation8], 16, %s99, [#allocation5]
    $region29: #{tpu_custom_call.1} parent=1 // pred_fallthru
      _
    // Predicated region
    $region30: #{tpu_custom_call.1} parent=1 // pred_check
      _
    $region31: #{tpu_custom_call.1} parent=1 // pred_check_branch
      %103 = sbr.rel (0) target = $region33
    $region32: #{tpu_custom_call.1} parent=1 // pred_region
      %105 = dma.done [#allocation5], 16
    $region33: #{tpu_custom_call.1} parent=1 // pred_fallthru
      _
    %106 = sfence
    %107 = vsyncpa [#allocation4], 1
    %108 = vsyncpa [#allocation7], 1
    %109 = vsyncpa [#allocation5], 1

</llo_original>
